<compile_context>
chip_gen: v5e
topology: v5e:2x2
jax: 0.10.0
libtpu: 0.0.40
codegen_flags: <defaults>
</compile_context>

<pallas_src>
import functools

import jax
import jax.numpy as jnp
from jax import lax
from jax.experimental import pallas as pl
from jax.experimental.pallas import tpu as pltpu


def _softplus(z):
    # numerically stable softplus = log(1 + exp(z))
    return jnp.maximum(z, 0.0) + jnp.log1p(jnp.exp(-jnp.abs(z)))


def _cause_loss_kernel(ids_ref, alpha_ref, u_ref, p_ref, n_ref, c_ref,
                       out_ref, acc_ref, *, B, l2rg, w_cf, cf_distance):
    del ids_ref  # only consumed by the BlockSpec index_maps (row gather)
    i = pl.program_id(0)
    E = u_ref.shape[-1]

    @pl.when(i == 0)
    def _():
        acc_ref[...] = jnp.zeros_like(acc_ref)

    alpha = alpha_ref[0, 0]
    u = u_ref[0].astype(jnp.float32)    # (1, E) gathered user row
    p = p_ref[0].astype(jnp.float32)    # (1, E) gathered positive-item row
    n = n_ref[0].astype(jnp.float32)    # (1, E) gathered negative-item row
    c = c_ref[0].astype(jnp.float32)    # (1, E) control row (item 0)

    # All 8 needed dot products with a single lane-axis reduction.
    lhs = jnp.concatenate([u, u, u, p, n, c, c, c], axis=0)   # (8, E)
    rhs = jnp.concatenate([p, n, u, p, n, p, n, c], axis=0)   # (8, E)
    rs = jnp.sum(lhs * rhs, axis=-1, keepdims=True)           # (8, 1)
    up, un, uu, pp, nn_sq, cp, cn, cc = (rs[k:k + 1] for k in range(8))

    # ---- factual: BCE-with-logits (targets 1 / 0) + L2 regularizer ----
    bce = _softplus(-alpha * up) + _softplus(alpha * un)
    emb = l2rg * (uu + pp + nn_sq)

    # ---- counterfactual on F.normalize'd embeddings ----
    eps = 1e-12                           # matches F.normalize default eps
    inv_p = lax.rsqrt(jnp.maximum(pp, eps * eps))     # = 1 / max(||p||, eps)
    inv_n = lax.rsqrt(jnp.maximum(nn_sq, eps * eps))
    inv_c = lax.rsqrt(jnp.maximum(cc, eps * eps))

    if cf_distance == "l2":
        # ||a-b||^2 = |a|^2 + |b|^2 - 2 a.b  (clamped at 0 vs. cancellation)
        nsq_c = cc * inv_c * inv_c
        nsq_p = pp * inv_p * inv_p
        nsq_n = nn_sq * inv_n * inv_n
        dist_p = jnp.maximum(nsq_c + nsq_p - 2.0 * cp * (inv_c * inv_p), 0.0)
        dist_n = jnp.maximum(nsq_c + nsq_n - 2.0 * cn * (inv_c * inv_n), 0.0)
        cf = (dist_p + dist_n) * (1.0 / E)
    elif cf_distance == "l1":
        nc = c * inv_c
        cf = (jnp.sum(jnp.abs(nc - p * inv_p), axis=-1, keepdims=True)
              + jnp.sum(jnp.abs(nc - n * inv_n), axis=-1, keepdims=True)) * (1.0 / E)
    else:  # "cos"
        cf = cp * (inv_c * inv_p) + cn * (inv_c * inv_n)

    # Per-row contribution, already scaled by 1/B (means over the batch).
    acc_ref[...] += (bce + emb + w_cf * cf) * (1.0 / B)

    @pl.when(i == B - 1)
    def _():
        out_ref[...] = acc_ref[...]


def cause_rank_loss(alpha, user_embs, item_embs, uid, pos, neg,
                    *, l2rg, w_cf, cf_distance="l2"):
    B = uid.shape[0]
    U, E = user_embs.shape
    I = item_embs.shape[0]

    # All gather indices travel as ONE 1-D int32 scalar-prefetch array (SMEM).
    ids = jnp.concatenate([uid, pos, neg]).astype(jnp.int32)      # (3B,)
    alpha_s = jnp.asarray(alpha, jnp.float32).reshape(1, 1)

    # Free metadata reshapes so gathered blocks' trailing dims equal the full
    # array dims exactly: tables (rows, 1, E) with (1, 1, E) blocks.
    user_3d = user_embs.reshape(U, 1, E)
    item_3d = item_embs.reshape(I, 1, E)

    kernel = functools.partial(_cause_loss_kernel, B=B, l2rg=float(l2rg),
                               w_cf=float(w_cf), cf_distance=cf_distance)

    grid_spec = pltpu.PrefetchScalarGridSpec(
        num_scalar_prefetch=1,
        grid=(B,),
        in_specs=[
            pl.BlockSpec(memory_space=pltpu.MemorySpace.SMEM),               # alpha
            pl.BlockSpec((1, 1, E), lambda i, idr: (idr[i], 0, 0)),          # user row
            pl.BlockSpec((1, 1, E), lambda i, idr: (idr[B + i], 0, 0)),      # pos row
            pl.BlockSpec((1, 1, E), lambda i, idr: (idr[2 * B + i], 0, 0)),  # neg row
            pl.BlockSpec((1, 1, E), lambda i, idr: (0, 0, 0)),               # control
        ],
        out_specs=pl.BlockSpec((1, 1), lambda i, idr: (0, 0)),
        scratch_shapes=[pltpu.VMEM((1, 1), jnp.float32)],
    )

    cost = pl.CostEstimate(
        flops=B * (16 * E + 64),
        transcendentals=B * 8,
        bytes_accessed=(3 * B + 1) * E * 4 + 3 * B * 4 + 8,
    )

    out = pl.pallas_call(
        kernel,
        out_shape=jax.ShapeDtypeStruct((1, 1), jnp.float32),
        grid_spec=grid_spec,
        compiler_params=pltpu.CompilerParams(
            dimension_semantics=("arbitrary",)),   # sequential scalar accumulation
        cost_estimate=cost,
    )(ids, alpha_s, user_3d, item_3d, item_3d, item_3d)
    return out[0, 0]


def _reference_loss(alpha, user_embs, item_embs, uid, pos, neg,
                    l2rg, w_cf, cf_distance="l2"):
    u = user_embs[uid]
    p = item_embs[pos]
    n = item_embs[neg]
    pos_logits = alpha * jnp.sum(u * p, -1)
    neg_logits = alpha * jnp.sum(u * n, -1)
    bce = jnp.mean(jax.nn.softplus(-pos_logits)) + jnp.mean(jax.nn.softplus(neg_logits))
    emb = l2rg * (jnp.mean(jnp.sum(u ** 2, -1)) + jnp.mean(jnp.sum(p ** 2, -1))
                  + jnp.mean(jnp.sum(n ** 2, -1)))
    norm = lambda x: x / jnp.maximum(jnp.linalg.norm(x, axis=-1, keepdims=True), 1e-12)
    nc, np_, nn_ = norm(item_embs[0:1]), norm(p), norm(n)
    if cf_distance == "l2":
        cf = jnp.mean((nc - np_) ** 2) + jnp.mean((nc - nn_) ** 2)
    elif cf_distance == "l1":
        cf = jnp.mean(jnp.abs(nc - np_)) + jnp.mean(jnp.abs(nc - nn_))
    else:
        cf = jnp.mean(jnp.sum(nc * np_, -1)) + jnp.mean(jnp.sum(nc * nn_, -1))
    return bce + emb + w_cf * cf


if __name__ == "__main__":
    key = jax.random.PRNGKey(0)
    user_num, item_num, edim, B = 64, 128, 32, 8
    l2rg, w_cf = 1e-4, 0.1

    k1, k2, k3, k4, k5 = jax.random.split(key, 5)
    # Deterministic synthetic params (same init ranges as the PyTorch module).
    user_embs = jax.random.uniform(k1, (user_num, edim), jnp.float32,
                                   minval=-0.5 / user_num, maxval=0.5 / user_num)
    item_embs = jax.random.uniform(k2, (item_num, edim), jnp.float32,
                                   minval=-0.5 / item_num, maxval=0.5 / item_num)
    alpha = jnp.float32(1e-6)
    # user_bias / item_bias exist in the module but do not affect the loss.

    uid = jax.random.randint(k3, (B,), 1, user_num)
    pos = jax.random.randint(k4, (B,), 1, item_num)
    neg = jax.random.randint(k5, (B,), 1, item_num)

    for dist in ("l2", "l1", "cos"):
        loss = cause_rank_loss(alpha, user_embs, item_embs, uid, pos, neg,
                               l2rg=l2rg, w_cf=w_cf, cf_distance=dist)
        loss = jax.block_until_ready(loss)
        ref = _reference_loss(alpha, user_embs, item_embs, uid, pos, neg,
                              l2rg, w_cf, dist)
        assert jnp.allclose(loss, ref, rtol=1e-5, atol=1e-6), (dist, loss, ref)

    print("KERNEL_OK")
</pallas_src>

<mosaic_0001>
module attributes {stable_mosaic.version = 11 : i64} {
  func.func @_cause_loss_kernel(%arg0: i32, %arg1: memref<24xi32, #tpu.memory_space<smem>>, %arg2: memref<1x1xf32, #tpu.memory_space<smem>>, %arg3: memref<1x1x32xf32, #tpu.memory_space<vmem>>, %arg4: memref<1x1x32xf32, #tpu.memory_space<vmem>>, %arg5: memref<1x1x32xf32, #tpu.memory_space<vmem>>, %arg6: memref<1x1x32xf32, #tpu.memory_space<vmem>>, %arg7: memref<1x1xf32, #tpu.memory_space<vmem>>, %arg8: memref<1x1xf32, #tpu.memory_space<vmem>>) attributes {dimension_semantics = [#tpu.dimension_semantics<arbitrary>], iteration_bounds = array<i64: 8>, scalar_prefetch = 1 : i64, scratch_operands = 1 : i64, tpu.core_type = #tpu.core_type<tc>, window_params = [{transform_indices = @transform_0, window_bounds = array<i64: 1, 1>}, {transform_indices = @transform_1, window_bounds = array<i64: 1, 1, 32>}, {transform_indices = @transform_2, window_bounds = array<i64: 1, 1, 32>}, {transform_indices = @transform_3, window_bounds = array<i64: 1, 1, 32>}, {transform_indices = @transform_4, window_bounds = array<i64: 1, 1, 32>}, {pipeline_mode = #tpu.pipeline_mode<synchronous>, transform_indices = @transform_5, window_bounds = array<i64: 1, 1>}]} {
    %c0_i32 = arith.constant 0 : i32
    %0 = arith.cmpi eq, %arg0, %c0_i32 : i32
    %1 = arith.extui %0 : i1 to i32
    %c0_i32_0 = arith.constant 0 : i32
    %2 = arith.cmpi ne, %1, %c0_i32_0 : i32
    scf.if %2 {
      %cst_35 = arith.constant 0.000000e+00 : f32
      %97 = vector.broadcast %cst_35 : f32 to vector<1x1xf32>
      %c0_36 = arith.constant 0 : index
      %c0_37 = arith.constant 0 : index
      %98 = vector.load %arg8[%c0_36, %c0_37] : memref<1x1xf32, #tpu.memory_space<vmem>>, vector<1x1xf32>
      tpu.vector_store %arg8[%c0_36, %c0_37], %97 {strides = array<i32>} : memref<1x1xf32, #tpu.memory_space<vmem>>, vector<1x1xf32>,
    } else {
    }
    %c0 = arith.constant 0 : index
    %c0_1 = arith.constant 0 : index
    %3 = memref.load %arg2[%c0, %c0_1] : memref<1x1xf32, #tpu.memory_space<smem>>
    %c0_2 = arith.constant 0 : index
    %c0_3 = arith.constant 0 : index
    %c0_4 = arith.constant 0 : index
    %4 = vector.load %arg3[%c0_2, %c0_3, %c0_4] : memref<1x1x32xf32, #tpu.memory_space<vmem>>, vector<1x1x32xf32>
    %5 = vector.shape_cast %4 : vector<1x1x32xf32> to vector<1x32xf32>
    %c0_5 = arith.constant 0 : index
    %c0_6 = arith.constant 0 : index
    %c0_7 = arith.constant 0 : index
    %6 = vector.load %arg4[%c0_5, %c0_6, %c0_7] : memref<1x1x32xf32, #tpu.memory_space<vmem>>, vector<1x1x32xf32>
    %7 = vector.shape_cast %6 : vector<1x1x32xf32> to vector<1x32xf32>
    %c0_8 = arith.constant 0 : index
    %c0_9 = arith.constant 0 : index
    %c0_10 = arith.constant 0 : index
    %8 = vector.load %arg5[%c0_8, %c0_9, %c0_10] : memref<1x1x32xf32, #tpu.memory_space<vmem>>, vector<1x1x32xf32>
    %9 = vector.shape_cast %8 : vector<1x1x32xf32> to vector<1x32xf32>
    %c0_11 = arith.constant 0 : index
    %c0_12 = arith.constant 0 : index
    %c0_13 = arith.constant 0 : index
    %10 = vector.load %arg6[%c0_11, %c0_12, %c0_13] : memref<1x1x32xf32, #tpu.memory_space<vmem>>, vector<1x1x32xf32>
    %11 = vector.shape_cast %10 : vector<1x1x32xf32> to vector<1x32xf32>
    %12 = tpu.concatenate %5, %5, %5, %7, %9, %11, %11, %11 in 0 : vector<1x32xf32>, vector<1x32xf32>, vector<1x32xf32>, vector<1x32xf32>, vector<1x32xf32>, vector<1x32xf32>, vector<1x32xf32>, vector<1x32xf32> -> vector<8x32xf32>
    %13 = tpu.concatenate %7, %9, %5, %7, %9, %7, %9, %11 in 0 : vector<1x32xf32>, vector<1x32xf32>, vector<1x32xf32>, vector<1x32xf32>, vector<1x32xf32>, vector<1x32xf32>, vector<1x32xf32>, vector<1x32xf32> -> vector<8x32xf32>
    %14 = arith.mulf %12, %13 : vector<8x32xf32>
    %cst = arith.constant dense<0.000000e+00> : vector<8xf32>
    %15 = vector.multi_reduction <add>, %14, %cst [1] : vector<8x32xf32> to vector<8xf32>
    %16 = vector.shape_cast %15 : vector<8xf32> to vector<8x1xf32>
    %17 = vector.extract_strided_slice %16 {offsets = [0, 0], sizes = [1, 1], strides = [1, 1]} : vector<8x1xf32> to vector<1x1xf32>
    %18 = vector.extract_strided_slice %16 {offsets = [1, 0], sizes = [1, 1], strides = [1, 1]} : vector<8x1xf32> to vector<1x1xf32>
    %19 = vector.extract_strided_slice %16 {offsets = [2, 0], sizes = [1, 1], strides = [1, 1]} : vector<8x1xf32> to vector<1x1xf32>
    %20 = vector.extract_strided_slice %16 {offsets = [3, 0], sizes = [1, 1], strides = [1, 1]} : vector<8x1xf32> to vector<1x1xf32>
    %21 = vector.extract_strided_slice %16 {offsets = [4, 0], sizes = [1, 1], strides = [1, 1]} : vector<8x1xf32> to vector<1x1xf32>
    %22 = vector.extract_strided_slice %16 {offsets = [5, 0], sizes = [1, 1], strides = [1, 1]} : vector<8x1xf32> to vector<1x1xf32>
    %23 = vector.extract_strided_slice %16 {offsets = [6, 0], sizes = [1, 1], strides = [1, 1]} : vector<8x1xf32> to vector<1x1xf32>
    %24 = vector.extract_strided_slice %16 {offsets = [7, 0], sizes = [1, 1], strides = [1, 1]} : vector<8x1xf32> to vector<1x1xf32>
    %cst_14 = arith.constant 0.000000e+00 : f32
    %25 = arith.subf %cst_14, %3 : f32
    %26 = vector.broadcast %25 : f32 to vector<1x1xf32>
    %27 = arith.mulf %26, %17 : vector<1x1xf32>
    %cst_15 = arith.constant 0.000000e+00 : f32
    %28 = vector.broadcast %cst_15 : f32 to vector<1x1xf32>
    %29 = arith.maximumf %27, %28 : vector<1x1xf32>
    %30 = math.absf %27 : vector<1x1xf32>
    %cst_16 = arith.constant 0.000000e+00 : f32
    %31 = vector.broadcast %cst_16 : f32 to vector<1x1xf32>
    %32 = arith.subf %31, %30 : vector<1x1xf32>
    %33 = math.exp %32 : vector<1x1xf32>
    %34 = math.log1p %33 : vector<1x1xf32>
    %35 = arith.addf %29, %34 : vector<1x1xf32>
    %36 = vector.broadcast %3 : f32 to vector<1x1xf32>
    %37 = arith.mulf %36, %18 : vector<1x1xf32>
    %cst_17 = arith.constant 0.000000e+00 : f32
    %38 = vector.broadcast %cst_17 : f32 to vector<1x1xf32>
    %39 = arith.maximumf %37, %38 : vector<1x1xf32>
    %40 = math.absf %37 : vector<1x1xf32>
    %cst_18 = arith.constant 0.000000e+00 : f32
    %41 = vector.broadcast %cst_18 : f32 to vector<1x1xf32>
    %42 = arith.subf %41, %40 : vector<1x1xf32>
    %43 = math.exp %42 : vector<1x1xf32>
    %44 = math.log1p %43 : vector<1x1xf32>
    %45 = arith.addf %39, %44 : vector<1x1xf32>
    %46 = arith.addf %35, %45 : vector<1x1xf32>
    %47 = arith.addf %19, %20 : vector<1x1xf32>
    %48 = arith.addf %47, %21 : vector<1x1xf32>
    %cst_19 = arith.constant 9.99999974E-5 : f32
    %49 = vector.broadcast %cst_19 : f32 to vector<1x1xf32>
    %50 = arith.mulf %49, %48 : vector<1x1xf32>
    %cst_20 = arith.constant 1.000000e-24 : f32
    %51 = vector.broadcast %cst_20 : f32 to vector<1x1xf32>
    %52 = arith.maximumf %20, %51 : vector<1x1xf32>
    %53 = math.rsqrt %52 : vector<1x1xf32>
    %cst_21 = arith.constant 1.000000e-24 : f32
    %54 = vector.broadcast %cst_21 : f32 to vector<1x1xf32>
    %55 = arith.maximumf %21, %54 : vector<1x1xf32>
    %56 = math.rsqrt %55 : vector<1x1xf32>
    %cst_22 = arith.constant 1.000000e-24 : f32
    %57 = vector.broadcast %cst_22 : f32 to vector<1x1xf32>
    %58 = arith.maximumf %24, %57 : vector<1x1xf32>
    %59 = math.rsqrt %58 : vector<1x1xf32>
    %60 = arith.mulf %24, %59 : vector<1x1xf32>
    %61 = arith.mulf %60, %59 : vector<1x1xf32>
    %62 = arith.mulf %20, %53 : vector<1x1xf32>
    %63 = arith.mulf %62, %53 : vector<1x1xf32>
    %64 = arith.mulf %21, %56 : vector<1x1xf32>
    %65 = arith.mulf %64, %56 : vector<1x1xf32>
    %66 = arith.addf %61, %63 : vector<1x1xf32>
    %cst_23 = arith.constant 2.000000e+00 : f32
    %67 = vector.broadcast %cst_23 : f32 to vector<1x1xf32>
    %68 = arith.mulf %67, %22 : vector<1x1xf32>
    %69 = arith.mulf %59, %53 : vector<1x1xf32>
    %70 = arith.mulf %68, %69 : vector<1x1xf32>
    %71 = arith.subf %66, %70 : vector<1x1xf32>
    %cst_24 = arith.constant 0.000000e+00 : f32
    %72 = vector.broadcast %cst_24 : f32 to vector<1x1xf32>
    %73 = arith.maximumf %71, %72 : vector<1x1xf32>
    %74 = arith.addf %61, %65 : vector<1x1xf32>
    %cst_25 = arith.constant 2.000000e+00 : f32
    %75 = vector.broadcast %cst_25 : f32 to vector<1x1xf32>
    %76 = arith.mulf %75, %23 : vector<1x1xf32>
    %77 = arith.mulf %59, %56 : vector<1x1xf32>
    %78 = arith.mulf %76, %77 : vector<1x1xf32>
    %79 = arith.subf %74, %78 : vector<1x1xf32>
    %cst_26 = arith.constant 0.000000e+00 : f32
    %80 = vector.broadcast %cst_26 : f32 to vector<1x1xf32>
    %81 = arith.maximumf %79, %80 : vector<1x1xf32>
    %82 = arith.addf %73, %81 : vector<1x1xf32>
    %cst_27 = arith.constant 3.125000e-02 : f32
    %83 = vector.broadcast %cst_27 : f32 to vector<1x1xf32>
    %84 = arith.mulf %82, %83 : vector<1x1xf32>
    %c0_28 = arith.constant 0 : index
    %c0_29 = arith.constant 0 : index
    %85 = vector.load %arg8[%c0_28, %c0_29] : memref<1x1xf32, #tpu.memory_space<vmem>>, vector<1x1xf32>
    %86 = arith.addf %46, %50 : vector<1x1xf32>
    %cst_30 = arith.constant 1.000000e-01 : f32
    %87 = vector.broadcast %cst_30 : f32 to vector<1x1xf32>
    %88 = arith.mulf %87, %84 : vector<1x1xf32>
    %89 = arith.addf %86, %88 : vector<1x1xf32>
    %cst_31 = arith.constant 1.250000e-01 : f32
    %90 = vector.broadcast %cst_31 : f32 to vector<1x1xf32>
    %91 = arith.mulf %89, %90 : vector<1x1xf32>
    %92 = arith.addf %85, %91 : vector<1x1xf32>
    %c0_32 = arith.constant 0 : index
    %c0_33 = arith.constant 0 : index
    %93 = vector.load %arg8[%c0_32, %c0_33] : memref<1x1xf32, #tpu.memory_space<vmem>>, vector<1x1xf32>
    tpu.vector_store %arg8[%c0_32, %c0_33], %92 {strides = array<i32>} : memref<1x1xf32, #tpu.memory_space<vmem>>, vector<1x1xf32>,
    %c7_i32 = arith.constant 7 : i32
    %94 = arith.cmpi eq, %arg0, %c7_i32 : i32
    %95 = arith.extui %94 : i1 to i32
    %c0_i32_34 = arith.constant 0 : i32
    %96 = arith.cmpi ne, %95, %c0_i32_34 : i32
    scf.if %96 {
      %c0_35 = arith.constant 0 : index
      %c0_36 = arith.constant 0 : index
      %97 = vector.load %arg8[%c0_35, %c0_36] : memref<1x1xf32, #tpu.memory_space<vmem>>, vector<1x1xf32>
      %c0_37 = arith.constant 0 : index
      %c0_38 = arith.constant 0 : index
      %98 = vector.load %arg7[%c0_37, %c0_38] : memref<1x1xf32, #tpu.memory_space<vmem>>, vector<1x1xf32>
      tpu.vector_store %arg7[%c0_37, %c0_38], %97 {strides = array<i32>} : memref<1x1xf32, #tpu.memory_space<vmem>>, vector<1x1xf32>,
    } else {
    }
    return
  }
  func.func @transform_0(%arg0: i32, %arg1: memref<24xi32, #tpu.memory_space<smem>>) -> (i32, i32) {
    %c0_i32 = arith.constant 0 : i32
    %c0_i32_0 = arith.constant 0 : i32
    %c0_i32_1 = arith.constant 0 : i32
    return %c0_i32, %c0_i32_0 : i32, i32
  }
  func.func @transform_1(%arg0: i32, %arg1: memref<24xi32, #tpu.memory_space<smem>>) -> (i32, i32, i32) {
    %0 = arith.index_cast %arg0 : i32 to index
    %1 = memref.load %arg1[%0] : memref<24xi32, #tpu.memory_space<smem>>
    %c0_i32 = arith.constant 0 : i32
    %c0_i32_0 = arith.constant 0 : i32
    %c0_i32_1 = arith.constant 0 : i32
    return %1, %c0_i32, %c0_i32_0 : i32, i32, i32
  }
  func.func @transform_2(%arg0: i32, %arg1: memref<24xi32, #tpu.memory_space<smem>>) -> (i32, i32, i32) {
    %c8_i32 = arith.constant 8 : i32
    %0 = arith.addi %c8_i32, %arg0 : i32
    %1 = arith.index_cast %0 : i32 to index
    %2 = memref.load %arg1[%1] : memref<24xi32, #tpu.memory_space<smem>>
    %c0_i32 = arith.constant 0 : i32
    %c0_i32_0 = arith.constant 0 : i32
    %c0_i32_1 = arith.constant 0 : i32
    return %2, %c0_i32, %c0_i32_0 : i32, i32, i32
  }
  func.func @transform_3(%arg0: i32, %arg1: memref<24xi32, #tpu.memory_space<smem>>) -> (i32, i32, i32) {
    %c16_i32 = arith.constant 16 : i32
    %0 = arith.addi %c16_i32, %arg0 : i32
    %1 = arith.index_cast %0 : i32 to index
    %2 = memref.load %arg1[%1] : memref<24xi32, #tpu.memory_space<smem>>
    %c0_i32 = arith.constant 0 : i32
    %c0_i32_0 = arith.constant 0 : i32
    %c0_i32_1 = arith.constant 0 : i32
    return %2, %c0_i32, %c0_i32_0 : i32, i32, i32
  }
  func.func @transform_4(%arg0: i32, %arg1: memref<24xi32, #tpu.memory_space<smem>>) -> (i32, i32, i32) {
    %c0_i32 = arith.constant 0 : i32
    %c0_i32_0 = arith.constant 0 : i32
    %c0_i32_1 = arith.constant 0 : i32
    %c0_i32_2 = arith.constant 0 : i32
    return %c0_i32, %c0_i32_0, %c0_i32_1 : i32, i32, i32
  }
  func.func @transform_5(%arg0: i32, %arg1: memref<24xi32, #tpu.memory_space<smem>>) -> (i32, i32) {
    %c0_i32 = arith.constant 0 : i32
    %c0_i32_0 = arith.constant 0 : i32
    %c0_i32_1 = arith.constant 0 : i32
    return %c0_i32, %c0_i32_0 : i32, i32
  }
}

</mosaic_0001>

<llo_original>
// kernel: tpu_custom_call.1
$region0: #{tpu_custom_call.1}
  #allocation0 [shape = 'u32[]', space=smem, size = 0x4, offset = 0x4, fixed_abs, tag = 'smem constant byte address 0x4 - core index']
  #allocation1 [shape = 'u32[72,128]{1,0:T(1,128)}', space=vmem, size = 0x9000, scoped, tag = 'internal scratch']
  #allocation2 [shape = 'f32[1,1]{1,0:T(1,128)}', space=vmem, size = 0x200, scoped, tag = 'scratch operand']
  #allocation3 [shape = 's32[1]{0}', space=sflag, size = 0x4, scoped, tag = 'scoped memory for tpu_custom_call.1']
  #allocation4 [shape = 'u8[512]{0}', space=smem, size = 0x200, scoped, tag = 'prefetched SMEM operand 0']
  #allocation5 [shape = 'f32[1,1]{1,0:T(1,128)S(6)}', space=smem, size = 0x200, scoped, tag = 'scoped memory for tpu_custom_call.1']
  %s0 = inlined_call_operand.vmem [shape: s32[24], index: 0, kind: input, shape index: {}]
  %s1 = inlined_call_operand.<no memory space> [shape: f32[1,1], index: 1, kind: input, shape index: {}]
  %s2 = inlined_call_operand.vmem [shape: f32[64,1,32], index: 2, kind: input, shape index: {}]
  %s3 = inlined_call_operand.vmem [shape: f32[128,1,32], index: 3, kind: input, shape index: {}]
  %s4 = inlined_call_operand.vmem [shape: f32[128,1,32], index: 4, kind: input, shape index: {}]
  %s5 = inlined_call_operand.vmem [shape: f32[128,1,32], index: 5, kind: input, shape index: {}]
  %s6 = inlined_call_operand.hbm [shape: f32[1,1], index: 6, kind: output, shape index: {}]
  %s7 = sld [smem:[#allocation0]]
  $region61: #{tpu_custom_call.1} parent=0
    _
  %s9 = ssub.s32 1, %s7
  %s10 = scalar_select 0, %s9, %s7
  %s12 = sshll.u32 %s0, 4
  %s13 = int_to_ptr.vmem [resolvable:$true] %s12
  %15 = dma.vmem_to_smem %s13, 16, [#allocation4], [#allocation3]
  %16 = sst [smem:[#allocation5]] %s1
  %18 = dma.done [#allocation3], 16
  %19 = sfence
  $region1: #{tpu_custom_call.1} parent=0
    #allocation6 [shape = 'u8[512]{0}', space=vmem, size = 0x400, scoped, tag = 'output window, operand 0, single buffered']
    #allocation7 [shape = 's32[2]{0}', space=sflag, size = 0x8, scoped, tag = 'scoped memory for tpu_custom_call.1']
    %20 = vsyncpa [#allocation7], 0
    loop: start=0, step=1, limit=10
    $region2: #{tpu_custom_call.1} parent=1 // loop_pre_header
      _
    $region3: #{tpu_custom_call.1} parent=1 // loop_header
      %s22 = sphi 0, %s26
      %p23 = scmp.ge.s32.totalorder %s22, 10
      %s30 = sphi 0, %s30
      %s32 = sphi 0, %s30
      %s33 = sphi 0, %s32
      %s47 = sphi 0, %s33
      %s55 = sphi 0, %s57
      %s58 = sphi 0, %s55
      %s59 = sphi 0, %s58
      %s75 = sphi 0, %s59
      %s85 = sphi 0, %s87
      %s88 = sphi 0, %s85
      %s89 = sphi 0, %s88
      %s105 = sphi 0, %s89
      %s115 = sphi 0, %s117
      %s118 = sphi 0, %s115
      %s119 = sphi 0, %s118
      %s135 = sphi 0, %s119
      %s139 = sphi 0, %s139
      %s141 = sphi 0, %s139
      %s142 = sphi 0, %s141
      %s156 = sphi 0, %s142
      %s160 = sphi 0, %s160
      %s162 = sphi 0, %s160
      %s163 = sphi 0, %s162
      %s177 = sphi 0, %s163
    $region4: #{tpu_custom_call.1} parent=1 // loop_header_branch
      %25 = sbr.rel (%p23) target = $region8
    $region5: #{tpu_custom_call.1} parent=1 // loop_body
      %s27 = ssub.s32 %s22, 1
      %s28 = ssub.s32 %s22, 2
      %s29 = sadd.s32 %s22, 1
      %s31 = sadd.s32 %s30, 1
      %p34 = scmp.eq.s32.totalorder %s22, 7
      %p35 = scmp.ne.s32.totalorder %s30, %s32
      %p36 = scmp.eq.s32.totalorder %s22, 0
      %p37 = por %p35, %p36
      %p38 = scmp.ne.s32.totalorder %s30, %s32
      %p39 = scmp.eq.s32.totalorder %s27, 7
      %p40 = por %p38, %p39
      %p41 = scmp.ne.s32.totalorder %s32, %s33
      %p42 = scmp.eq.s32.totalorder %s27, 0
      %p43 = por %p41, %p42
      %p44 = scmp.ne.s32.totalorder %s32, %s33
      %p45 = scmp.eq.s32.totalorder %s28, 7
      %p46 = por %p44, %p45
      %p48 = scmp.ne.s32.totalorder %s33, %s47
      %p49 = scmp.eq.s32.totalorder %s28, 0
      %p50 = por %p48, %p49
      %s51 = sld [smem:[#allocation4 + %s22]]
      %s52 = sld [smem:[#allocation4 + %s29]]
      %s53 = ssub.s32 %s51, %s52
      %p54 = scmp.eq.s32.totalorder %s53, 0
      %s56 = sadd.s32 %s55, 1
      %s57 = scalar_select %p54, %s55, %s56
      %p60 = pneg %p54
      %p61 = scmp.eq.s32.totalorder %s22, 7
      %p62 = por %p60, %p61
      %p63 = scmp.ne.s32.totalorder %s55, %s58
      %p64 = scmp.eq.s32.totalorder %s22, 0
      %p65 = por %p63, %p64
      %p66 = scmp.ne.s32.totalorder %s55, %s58
      %p67 = scmp.eq.s32.totalorder %s27, 7
      %p68 = por %p66, %p67
      %p69 = scmp.ne.s32.totalorder %s58, %s59
      %p70 = scmp.eq.s32.totalorder %s27, 0
      %p71 = por %p69, %p70
      %p72 = scmp.ne.s32.totalorder %s58, %s59
      %p73 = scmp.eq.s32.totalorder %s28, 7
      %p74 = por %p72, %p73
      %p76 = scmp.ne.s32.totalorder %s59, %s75
      %p77 = scmp.eq.s32.totalorder %s28, 0
      %p78 = por %p76, %p77
      %s79 = sadd.s32 %s22, 8
      %s80 = sld [smem:[#allocation4 + %s79]]
      %s81 = sadd.s32 %s29, 8
      %s82 = sld [smem:[#allocation4 + %s81]]
      %s83 = ssub.s32 %s80, %s82
      %p84 = scmp.eq.s32.totalorder %s83, 0
      %s86 = sadd.s32 %s85, 1
      %s87 = scalar_select %p84, %s85, %s86
      %p90 = pneg %p84
      %p91 = scmp.eq.s32.totalorder %s22, 7
      %p92 = por %p90, %p91
      %p93 = scmp.ne.s32.totalorder %s85, %s88
      %p94 = scmp.eq.s32.totalorder %s22, 0
      %p95 = por %p93, %p94
      %p96 = scmp.ne.s32.totalorder %s85, %s88
      %p97 = scmp.eq.s32.totalorder %s27, 7
      %p98 = por %p96, %p97
      %p99 = scmp.ne.s32.totalorder %s88, %s89
      %p100 = scmp.eq.s32.totalorder %s27, 0
      %p101 = por %p99, %p100
      %p102 = scmp.ne.s32.totalorder %s88, %s89
      %p103 = scmp.eq.s32.totalorder %s28, 7
      %p104 = por %p102, %p103
      %p106 = scmp.ne.s32.totalorder %s89, %s105
      %p107 = scmp.eq.s32.totalorder %s28, 0
      %p108 = por %p106, %p107
      %s109 = sadd.s32 %s22, 16
      %s110 = sld [smem:[#allocation4 + %s109]]
      %s111 = sadd.s32 %s29, 16
      %s112 = sld [smem:[#allocation4 + %s111]]
      %s113 = ssub.s32 %s110, %s112
      %p114 = scmp.eq.s32.totalorder %s113, 0
      %s116 = sadd.s32 %s115, 1
      %s117 = scalar_select %p114, %s115, %s116
      %p120 = pneg %p114
      %p121 = scmp.eq.s32.totalorder %s22, 7
      %p122 = por %p120, %p121
      %p123 = scmp.ne.s32.totalorder %s115, %s118
      %p124 = scmp.eq.s32.totalorder %s22, 0
      %p125 = por %p123, %p124
      %p126 = scmp.ne.s32.totalorder %s115, %s118
      %p127 = scmp.eq.s32.totalorder %s27, 7
      %p128 = por %p126, %p127
      %p129 = scmp.ne.s32.totalorder %s118, %s119
      %p130 = scmp.eq.s32.totalorder %s27, 0
      %p131 = por %p129, %p130
      %p132 = scmp.ne.s32.totalorder %s118, %s119
      %p133 = scmp.eq.s32.totalorder %s28, 7
      %p134 = por %p132, %p133
      %p136 = scmp.ne.s32.totalorder %s119, %s135
      %p137 = scmp.eq.s32.totalorder %s28, 0
      %p138 = por %p136, %p137
      %s140 = sadd.s32 %s139, 1
      %p143 = scmp.eq.s32.totalorder %s22, 7
      %p144 = scmp.ne.s32.totalorder %s139, %s141
      %p145 = scmp.eq.s32.totalorder %s22, 0
      %p146 = por %p144, %p145
      %p147 = scmp.ne.s32.totalorder %s139, %s141
      %p148 = scmp.eq.s32.totalorder %s27, 7
      %p149 = por %p147, %p148
      %p150 = scmp.ne.s32.totalorder %s141, %s142
      %p151 = scmp.eq.s32.totalorder %s27, 0
      %p152 = por %p150, %p151
      %p153 = scmp.ne.s32.totalorder %s141, %s142
      %p154 = scmp.eq.s32.totalorder %s28, 7
      %p155 = por %p153, %p154
      %p157 = scmp.ne.s32.totalorder %s142, %s156
      %p158 = scmp.eq.s32.totalorder %s28, 0
      %p159 = por %p157, %p158
      %s161 = sadd.s32 %s160, 1
      %p164 = scmp.eq.s32.totalorder %s22, 7
      %p165 = scmp.ne.s32.totalorder %s160, %s162
      %p166 = scmp.eq.s32.totalorder %s22, 0
      %p167 = por %p165, %p166
      %p168 = scmp.ne.s32.totalorder %s160, %s162
      %p169 = scmp.eq.s32.totalorder %s27, 7
      %p170 = por %p168, %p169
      %p171 = scmp.ne.s32.totalorder %s162, %s163
      %p172 = scmp.eq.s32.totalorder %s27, 0
      %p173 = por %p171, %p172
      %p174 = scmp.ne.s32.totalorder %s162, %s163
      %p175 = scmp.eq.s32.totalorder %s28, 7
      %p176 = por %p174, %p175
      %p178 = scmp.ne.s32.totalorder %s163, %s177
      %p179 = scmp.eq.s32.totalorder %s28, 0
      %p180 = por %p178, %p179
      %p181 = scmp.le.s32.totalorder 1, %s22
      %p182 = scmp.lt.s32.totalorder %s22, 9
      %p183 = pnand %p181, %p182
      %p184 = pneg %p183
      // Predicated region
      $region9: #{tpu_custom_call.1} parent=5 // pred_check
        _
      $region10: #{tpu_custom_call.1} parent=5 // pred_check_branch
        %186 = sbr.rel (%p183) target = $region12
      $region11: #{tpu_custom_call.1} parent=5 // pred_region
        %s187 = ssub.s32 %s22, 1
        // Predicated region
        $region13: #{tpu_custom_call.1} parent=11 // pred_check
          %p188 = pneg %p43
        $region14: #{tpu_custom_call.1} parent=11 // pred_check_branch
          %190 = sbr.rel (%p188) target = $region16
        $region15: #{tpu_custom_call.1} parent=11 // pred_region
          _
        $region16: #{tpu_custom_call.1} parent=11 // pred_fallthru
          _
        // Predicated region
        $region17: #{tpu_custom_call.1} parent=11 // pred_check
          %p191 = pneg %p152
        $region18: #{tpu_custom_call.1} parent=11 // pred_check_branch
          %193 = sbr.rel (%p191) target = $region20
        $region19: #{tpu_custom_call.1} parent=11 // pred_region
          _
        $region20: #{tpu_custom_call.1} parent=11 // pred_fallthru
          _
      $region12: #{tpu_custom_call.1} parent=5 // pred_fallthru
        _
      %p194 = scmp.lt.s32.totalorder %s22, 8
      // Predicated region
      $region21: #{tpu_custom_call.1} parent=5 // pred_check
        %p195 = pneg %p194
      $region22: #{tpu_custom_call.1} parent=5 // pred_check_branch
        %197 = sbr.rel (%p195) target = $region24
      $region23: #{tpu_custom_call.1} parent=5 // pred_region
        // Predicated region
        $region25: #{tpu_custom_call.1} parent=23 // pred_check
          %p198 = pneg %p65
        $region26: #{tpu_custom_call.1} parent=23 // pred_check_branch
          %200 = sbr.rel (%p198) target = $region28
        $region27: #{tpu_custom_call.1} parent=23 // pred_region
          %s201 = sld [smem:[#allocation4 + %s22]]
          %p202 = scmp.lt.s32.totalorder %s201, 63
          %s203 = scalar_select %p202, %s201, 63
          %s204 = scalar_lea.vmem %s2, %s203
          %s205 = sld [smem:[#allocation4 + %s22]]
        $region28: #{tpu_custom_call.1} parent=23 // pred_fallthru
          _
        // Predicated region
        $region29: #{tpu_custom_call.1} parent=23 // pred_check
          %p206 = pneg %p95
        $region30: #{tpu_custom_call.1} parent=23 // pred_check_branch
          %208 = sbr.rel (%p206) target = $region32
        $region31: #{tpu_custom_call.1} parent=23 // pred_region
          %s209 = sadd.s32 %s22, 8
          %s210 = sld [smem:[#allocation4 + %s209]]
          %p211 = scmp.lt.s32.totalorder %s210, 127
          %s212 = scalar_select %p211, %s210, 127
          %s213 = scalar_lea.vmem %s3, %s212
          %s214 = sadd.s32 %s22, 8
          %s215 = sld [smem:[#allocation4 + %s214]]
        $region32: #{tpu_custom_call.1} parent=23 // pred_fallthru
          _
        // Predicated region
        $region33: #{tpu_custom_call.1} parent=23 // pred_check
          %p216 = pneg %p125
        $region34: #{tpu_custom_call.1} parent=23 // pred_check_branch
          %218 = sbr.rel (%p216) target = $region36
        $region35: #{tpu_custom_call.1} parent=23 // pred_region
          %s219 = sadd.s32 %s22, 16
          %s220 = sld [smem:[#allocation4 + %s219]]
          %p221 = scmp.lt.s32.totalorder %s220, 127
          %s222 = scalar_select %p221, %s220, 127
          %s223 = scalar_lea.vmem %s4, %s222
          %s224 = sadd.s32 %s22, 16
          %s225 = sld [smem:[#allocation4 + %s224]]
        $region36: #{tpu_custom_call.1} parent=23 // pred_fallthru
          _
      $region24: #{tpu_custom_call.1} parent=5 // pred_fallthru
        _
      %p226 = scmp.le.s32.totalorder 1, %s22
      %p227 = scmp.lt.s32.totalorder %s22, 9
      %p228 = pnand %p226, %p227
      %p229 = pneg %p228
      // Predicated region
      $region37: #{tpu_custom_call.1} parent=5 // pred_check
        _
      $region38: #{tpu_custom_call.1} parent=5 // pred_check_branch
        %231 = sbr.rel (%p228) target = $region40
      $region39: #{tpu_custom_call.1} parent=5 // pred_region
        %s232 = ssub.s32 %s22, 1
        %p233 = pneg %p43
        %p234 = pneg %p40
        %s235 = sld [smem:[#allocation4 + %s27]]
        %p236 = scmp.lt.s32.totalorder %s235, 63
        %s237 = scalar_select %p236, %s235, 63
        %s238 = scalar_lea.vmem %s2, %s237
        %p239 = pneg %p71
        %p240 = pneg %p68
        %s241 = sadd.s32 %s27, 8
        %s242 = sld [smem:[#allocation4 + %s241]]
        %p243 = scmp.lt.s32.totalorder %s242, 127
        %s244 = scalar_select %p243, %s242, 127
        %s245 = scalar_lea.vmem %s3, %s244
        %p246 = pneg %p101
        %p247 = pneg %p98
        %s248 = sadd.s32 %s27, 16
        %s249 = sld [smem:[#allocation4 + %s248]]
        %p250 = scmp.lt.s32.totalorder %s249, 127
        %s251 = scalar_select %p250, %s249, 127
        %s252 = scalar_lea.vmem %s4, %s251
        %p253 = pneg %p131
        %p254 = pneg %p128
        %p255 = pneg %p152
        %p256 = pneg %p149
        %p257 = pneg %p173
        %p258 = pneg %p170
        %s259 = sld [smem:[#allocation4 + %s27]]
        %p260 = scmp.lt.s32.totalorder %s259, 63
        %s261 = scalar_select %p260, %s259, 63
        %s262 = scalar_lea.vmem %s2, %s261
        %s263 = sld [smem:[#allocation4 + %s27]]
        %s264 = sadd.s32 %s27, 8
        %s265 = sld [smem:[#allocation4 + %s264]]
        %p266 = scmp.lt.s32.totalorder %s265, 127
        %s267 = scalar_select %p266, %s265, 127
        %s268 = scalar_lea.vmem %s3, %s267
        %s269 = sadd.s32 %s27, 8
        %s270 = sld [smem:[#allocation4 + %s269]]
        %s271 = sadd.s32 %s27, 16
        %s272 = sld [smem:[#allocation4 + %s271]]
        %p273 = scmp.lt.s32.totalorder %s272, 127
        %s274 = scalar_select %p273, %s272, 127
        %s275 = scalar_lea.vmem %s4, %s274
        %s276 = sadd.s32 %s27, 16
        %s277 = sld [smem:[#allocation4 + %s276]]
        %p278 = scmp.eq.s32.totalorder %s27, 0
        // Predicated region
        $region41: #{tpu_custom_call.1} parent=39 // pred_check
          %p279 = pneg %p278
        $region42: #{tpu_custom_call.1} parent=39 // pred_check_branch
          %281 = sbr.rel (%p279) target = $region44
        $region43: #{tpu_custom_call.1} parent=39 // pred_region
          %vm282 = vcmask 0
          %283 = vst.msk [vmem:[#allocation2] sm:$0x1] %vm282, 0.0
        $region44: #{tpu_custom_call.1} parent=39 // pred_fallthru
          _
        %s284 = sld [smem:[#allocation5]]
        %v285 = vld [vmem:[%s262] sm:$0x1]
        %v286 = vld [vmem:[%s268] sm:$0x1]
        %v287 = vld [vmem:[%s275] sm:$0x1]
        %v288 = vld [vmem:[%s5] sm:$0x1]
        %v290 = vperm.slane %v285, 0
        %v293 = vperm.slane %v286, 0
        %v296 = vperm.slane %v287, 0
        %v299 = vperm.slane %v288, 0
        %vm301 = vcmask 1040384
        %v302 = vsel %vm301, %v285, %v290
        %vm303 = vcmask 1041408
        %v304 = vsel %vm303, %v302, %v290
        %vm305 = vcmask 1042432
        %v306 = vsel %vm305, %v304, %v293
        %vm307 = vcmask 1043456
        %v308 = vsel %vm307, %v306, %v296
        %vm309 = vcmask 1044480
        %v310 = vsel %vm309, %v308, %v299
        %vm311 = vcmask 1045504
        %v312 = vsel %vm311, %v310, %v299
        %vm313 = vcmask 1046528
        %v314 = vsel %vm313, %v312, %v299
        %v315 = vsel %vm301, %v286, %v296
        %v316 = vsel %vm303, %v315, %v290
        %v317 = vsel %vm305, %v316, %v293
        %v318 = vsel %vm307, %v317, %v296
        %v319 = vsel %vm309, %v318, %v293
        %v320 = vsel %vm311, %v319, %v296
        %v321 = vsel %vm313, %v320, %v299
        %v322 = vmul.f32 %v314, %v321
        %vm323 = vcmask 261120
        %v324 = vsel %vm323, %v322, 0.0
        %325 = vadd.xlane.f32.xlu0 %v324
        %v326 = vpop.xlane.xlu0 %325
        %s327 = ssub.f32 0.0, %s284
        %v328 = vstv %s327
        %v329 = vmul.f32 %v328, %v326
        %v330 = vmax.f32 %v329, 0.0
        %v331 = vand.u32 2147483647, %v329
        %v332 = vsub.f32 0.0, %v331
        %v333 = vmul.f32 %v332, 1.442695
        %v334 = vpow.pop %v333
        %v335 = vadd.f32 %v334, 1.0
        %v336 = vlog2.pop %v335
        %v337 = vmul.f32 %v336, 0.6931472
        %v338 = vmul.f32 -0.5, %v334
        %v339 = vadd.f32 %v338, 1.0
        %v340 = vmul.f32 %v339, %v334
        %v341 = vand.u32 2147483647, %v334
        %vm342 = vcmp.lt.f32.partialorder %v341, 0.0004427343
        %v343 = vsel %vm342, %v340, %v337
        %v344 = vadd.f32 %v330, %v343
        %v345 = vstv %s284
        %v346 = vmul.f32 %v345, %v326
        %v347 = vmax.f32 %v346, 0.0
        %v348 = vand.u32 2147483647, %v346
        %v349 = vsub.f32 0.0, %v348
        %v350 = vmul.f32 %v349, 1.442695
        %v351 = vpow.pop %v350
        %v352 = vadd.f32 %v351, 1.0
        %v353 = vlog2.pop %v352
        %v354 = vmul.f32 %v353, 0.6931472
        %v355 = vmul.f32 -0.5, %v351
        %v356 = vadd.f32 %v355, 1.0
        %v357 = vmul.f32 %v356, %v351
        %v358 = vand.u32 2147483647, %v351
        %vm359 = vcmp.lt.f32.partialorder %v358, 0.0004427343
        %v360 = vsel %vm359, %v357, %v354
        %v361 = vadd.f32 %v347, %v360
        %v363 = vrot.slane %v361, 1
        %v365 = vadd.f32 %v344, %v363
        %v367 = vrot.slane %v326, 1
        %v369 = vadd.f32 %v326, %v367
        %v370 = vrot.slane %v326, 2
        %v372 = vadd.f32 %v369, %v370
        %v373 = vmul.f32 %v372, 0.0001
        %v374 = vmax.f32 %v326, 1e-24
        %v375 = vrsqrt.pop %v374
        %v376 = vmul.f32 %v375, %v374
        %v377 = vmul.f32 %v376, %v375
        %v378 = vmul.f32 0.5, %v377
        %v379 = vsub.f32 1.5, %v378
        %v380 = vmul.f32 %v375, %v379
        %vm381 = vweird.f32 %v374
        %vm382 = vweird.f32 %v375
        %vm383 = vmor %vm381, %vm382
        %v384 = vsel %vm383, %v375, %v380
        %v385 = vmul.f32 %v326, %v384
        %v386 = vmul.f32 %v385, %v384
        %v388 = vrot.slane %v386, 4
        %v390 = vadd.f32 %v386, %v388
        %v391 = vmul.f32 %v326, 2.0
        %v393 = vrot.slane %v384, 4
        %v395 = vmul.f32 %v384, %v393
        %v397 = vrot.slane %v395, 2
        %v399 = vmul.f32 %v391, %v397
        %v401 = vrot.slane %v399, 6
        %v403 = vsub.f32 %v390, %v401
        %v404 = vmax.f32 %v403, 0.0
        %v405 = vrot.slane %v386, 5
        %v407 = vadd.f32 %v386, %v405
        %v408 = vrot.slane %v384, 5
        %v410 = vmul.f32 %v384, %v408
        %v412 = vrot.slane %v410, 1
        %v414 = vmul.f32 %v391, %v412
        %v416 = vrot.slane %v414, 7
        %v418 = vsub.f32 %v407, %v416
        %v419 = vmax.f32 %v418, 0.0
        %v420 = vadd.f32 %v404, %v419
        %v421 = vmul.f32 %v420, 0.03125
        %v422 = vld [vmem:[#allocation2] sm:$0x1]
        %v424 = vrot.slane %v373, 2
        %v426 = vadd.f32 %v365, %v424
        %v427 = vmul.f32 %v421, 0.1
        %v429 = vrot.slane %v427, 7
        %v431 = vadd.f32 %v426, %v429
        %v432 = vmul.f32 %v431, 0.125
        %v433 = vadd.f32 %v422, %v432
        %vm434 = vcmask 0
        %435 = vst.msk [vmem:[#allocation2] sm:$0x1] %vm434, %v433
        %p436 = scmp.eq.s32.totalorder %s27, 7
        // Predicated region
        $region45: #{tpu_custom_call.1} parent=39 // pred_check
          %p437 = pneg %p436
        $region46: #{tpu_custom_call.1} parent=39 // pred_check_branch
          %439 = sbr.rel (%p437) target = $region48
        $region47: #{tpu_custom_call.1} parent=39 // pred_region
          %v440 = vld [vmem:[#allocation2] sm:$0x1]
          %441 = vst.msk [vmem:[#allocation6] sm:$0x1] %vm434, %v440
        $region48: #{tpu_custom_call.1} parent=39 // pred_fallthru
          _
        // Predicated region
        $region49: #{tpu_custom_call.1} parent=39 // pred_check
          %p442 = pneg %p170
        $region50: #{tpu_custom_call.1} parent=39 // pred_check_branch
          %444 = sbr.rel (%p442) target = $region52
        $region51: #{tpu_custom_call.1} parent=39 // pred_region
          %446 = vsyncadd [#allocation7], 0
          %s448 = sshll.u32 [#allocation6], 4
          %s449 = int_to_ptr.vmem [resolvable:$true] %s448
          %s450 = sshll.u32 %s6, 4
          %s451 = int_to_ptr.hbm [resolvable:$true] %s450
          %453 = dma.vmem_to_hbm [thread:$0]  %s449, 16, %s451, [#allocation7]
        $region52: #{tpu_custom_call.1} parent=39 // pred_fallthru
          _
        // Predicated region
        $region53: #{tpu_custom_call.1} parent=39 // pred_check
          %p454 = pneg %p170
        $region54: #{tpu_custom_call.1} parent=39 // pred_check_branch
          %456 = sbr.rel (%p454) target = $region56
        $region55: #{tpu_custom_call.1} parent=39 // pred_region
          %458 = dma.done [#allocation7], 16
        $region56: #{tpu_custom_call.1} parent=39 // pred_fallthru
          _
      $region40: #{tpu_custom_call.1} parent=5 // pred_fallthru
        _
      %p459 = scmp.le.s32.totalorder 2, %s22
      // Predicated region
      $region57: #{tpu_custom_call.1} parent=5 // pred_check
        %p460 = pneg %p459
      $region58: #{tpu_custom_call.1} parent=5 // pred_check_branch
        %462 = sbr.rel (%p460) target = $region60
      $region59: #{tpu_custom_call.1} parent=5 // pred_region
        %s463 = ssub.s32 %s22, 2
      $region60: #{tpu_custom_call.1} parent=5 // pred_fallthru
        _
    $region6: #{tpu_custom_call.1} parent=1 // loop_footer
      %s26 = sadd.s32 1, %s22
    $region7: #{tpu_custom_call.1} parent=1 // loop_footer_branch
      %21 = sbr.rel target = $region3
    $region8: #{tpu_custom_call.1} parent=1 // loop_exit
      _
    %464 = vsyncpa [#allocation7], 1
    %s465 = scalar_lea.sflag [#allocation7], 1
    %466 = vsyncpa %s465, 1

</llo_original>
